<compile_context>
chip_gen: v6e
topology: v6e:2x2x1
jax: 0.10.0
libtpu: 0.0.40
codegen_flags: <defaults>
</compile_context>

<pallas_src>
import numpy as np
import jax
import jax.numpy as jnp
from jax.experimental import pallas as pl
from jax.experimental.pallas import tpu as pltpu

NJOINTS = 20
NMID = 10

_PACK = 16              # rows packed per lane-dense row -> last dims 320 / 160
_MAX_ROW_TILE = 4096    # packed rows per grid step (multiple of 8)
_MIN_GRID_STEPS = 4     # keep the pipeline (and v7x's 2 TensorCores) fed
_VMEM_LIMIT = 32 * 1024 * 1024  # fits tm=4096 double-buffered tiles on v5e..v7x


def build_weight() -> np.ndarray:
    """Deterministic pooling weight, identical to the PyTorch module __init__."""
    LeftHip = [0, 14, 15]
    LeftLeg = [14, 15, 16]
    RightHip = [0, 16, 17]
    RightLeg = [17, 18, 19]
    Back = [0, 2, 3]
    Neck = [3, 4, 5]
    LeftShoulder = [3, 6, 7]
    LeftArm = [7, 8, 9]
    RightShoulder = [3, 10, 11]
    RightArm = [11, 12, 13]
    groups = [LeftHip, LeftLeg, RightHip, RightLeg, Back,
              Neck, LeftShoulder, LeftArm, RightShoulder, RightArm]
    w = np.zeros((NJOINTS, NMID), dtype=np.float32)
    for col, joints in enumerate(groups):
        w[joints, col] = 1.0
    scale = np.sum(w, axis=0, keepdims=True)
    return w / scale


def _round_up(a: int, b: int) -> int:
    return ((a + b - 1) // b) * b


def _pick_pack(m: int) -> int:
    """Largest pack factor in {16, 8, 4, 2, 1} dividing M."""
    for p in (16, 8, 4, 2):
        if m % p == 0:
            return p
    return 1


def _choose_row_tile(m_rows: int) -> int:
    """Packed-row tile: big enough to amortize the ~0.35us per-step overhead,
    small enough to fit double-buffered under _VMEM_LIMIT, and split into at
    least _MIN_GRID_STEPS grid steps so the pipeline / both v7x TCs get work."""
    if m_rows <= 8 * _MIN_GRID_STEPS:
        return m_rows  # tiny: one full-extent block (block dim == array dim is legal)
    return min(_MAX_ROW_TILE, _round_up(pl.cdiv(m_rows, _MIN_GRID_STEPS), 8))


def _pack_weight(weight, pack: int, dtype) -> jnp.ndarray:
    """Block-diagonal expansion kron(eye(P), weight) -> (V*P, W*P).

    kron(eye, w)[p*V+v, q*W+w] = (p == q) * weight[v, w], so the packed matmul
    is exactly the per-row einsum.  Built with numpy when `weight` is a host
    constant so it constant-folds instead of being re-emitted every call."""
    if isinstance(weight, np.ndarray):
        wp = np.kron(np.eye(pack, dtype=np.float32), weight.astype(np.float32))
        return jnp.asarray(wp, dtype=dtype)
    return jnp.kron(jnp.eye(pack, dtype=weight.dtype), weight).astype(dtype)


def _pool_kernel(x_ref, w_ref, o_ref):
    # x_ref: (tm, V*P) tile, w_ref: (V*P, W*P) resident, o_ref: (tm, W*P) tile
    o_ref[...] = jnp.dot(
        x_ref[...], w_ref[...], preferred_element_type=jnp.float32
    ).astype(o_ref.dtype)


def _pooled_matmul(x2d: jnp.ndarray, weight, pack: int) -> jnp.ndarray:
    """x2d: (m_rows, V*pack) -> (m_rows, W*pack) via the block-diagonal weight."""
    m_rows, vk = x2d.shape
    wk = NMID * pack
    w_packed = _pack_weight(weight, pack, x2d.dtype)

    tm = _choose_row_tile(m_rows)
    grid = (pl.cdiv(m_rows, tm),)  # Pallas masks the ragged last block

    itemsize = jnp.dtype(x2d.dtype).itemsize
    cost = pl.CostEstimate(
        flops=2 * m_rows * vk * wk,
        transcendentals=0,
        bytes_accessed=(m_rows * vk + vk * wk + m_rows * wk) * itemsize,
    )

    return pl.pallas_call(
        _pool_kernel,
        out_shape=jax.ShapeDtypeStruct((m_rows, wk), x2d.dtype),
        grid_spec=pltpu.PrefetchScalarGridSpec(
            num_scalar_prefetch=0,
            grid=grid,
            in_specs=[
                pl.BlockSpec((tm, vk), lambda i: (i, 0)),
                pl.BlockSpec((vk, wk), lambda i: (0, 0)),  # weight stays resident
            ],
            out_specs=pl.BlockSpec((tm, wk), lambda i: (i, 0)),
        ),
        compiler_params=pltpu.CompilerParams(
            dimension_semantics=("parallel",),   # megacore-shardable on v7x
            vmem_limit_bytes=_VMEM_LIMIT,
        ),
        cost_estimate=cost,
    )(x2d, w_packed)


def pool_joint_to_mid(x: jnp.ndarray, weight) -> jnp.ndarray:
    """x: (N, C, T, V) -> (N, C, T, W); same math as torch.einsum('nctv,vw->nctw')."""
    N, C, T, V = x.shape
    W = NMID
    M = N * C * T
    x_flat = x.reshape(M, V)  # free, contiguous HBM reshape

    pack = _pick_pack(M)
    if pack >= 8 or M < _PACK:
        # Lane-dense single path (P=16 or the still-acceptable P=8), or tiny M.
        out_flat = _pooled_matmul(
            x_flat.reshape(M // pack, V * pack), weight, pack
        ).reshape(M, W)
    else:
        # M not divisible by 8: don't drop the pack factor for the whole array
        # (lane-sparse perf cliff).  Bulk at P=16, <16-row tail at P=1.
        # TODO(synk): a fully copy-free ragged-M path needs manual DMA from a
        # pl.ANY input; the prefix slice below may materialize one extra pass.
        m_main = (M // _PACK) * _PACK
        out_main = _pooled_matmul(
            x_flat[:m_main].reshape(m_main // _PACK, V * _PACK), weight, _PACK
        ).reshape(m_main, W)
        out_tail = _pooled_matmul(x_flat[m_main:], weight, 1)
        out_flat = jnp.concatenate([out_main, out_tail], axis=0)

    return out_flat.reshape(N, C, T, W)  # free, contiguous HBM reshape


if __name__ == "__main__":
    weight = build_weight()
    w_jnp = jnp.asarray(weight)

    # Small demo shape consistent with the module (joints last, V=20).
    key = jax.random.PRNGKey(0)
    N, C, T = 2, 4, 8
    x = jax.random.normal(key, (N, C, T, NJOINTS), dtype=jnp.float32)
    out = jax.block_until_ready(pool_joint_to_mid(x, weight))
    ref = jnp.einsum("nctv,vw->nctw", x, w_jnp)
    np.testing.assert_allclose(np.asarray(out), np.asarray(ref), rtol=1e-5, atol=1e-5)

    # Multi-step grid + ragged last block (M = 4*16*257 -> 1028 packed rows -> 4 steps).
    x2 = jax.random.normal(jax.random.PRNGKey(1), (4, 16, 257, NJOINTS), dtype=jnp.float32)
    out2 = jax.block_until_ready(pool_joint_to_mid(x2, weight))
    ref2 = jnp.einsum("nctv,vw->nctw", x2, w_jnp)
    np.testing.assert_allclose(np.asarray(out2), np.asarray(ref2), rtol=1e-5, atol=1e-5)

    # Awkward M (2*3*7 = 42, not divisible by 8): exercises the P=16 bulk + P=1 tail split.
    x3 = jax.random.normal(jax.random.PRNGKey(2), (2, 3, 7, NJOINTS), dtype=jnp.float32)
    out3 = jax.block_until_ready(pool_joint_to_mid(x3, weight))
    ref3 = jnp.einsum("nctv,vw->nctw", x3, w_jnp)
    np.testing.assert_allclose(np.asarray(out3), np.asarray(ref3), rtol=1e-5, atol=1e-5)

    print("KERNEL_OK")
</pallas_src>

<mosaic_0001>
module attributes {stable_mosaic.version = 11 : i64} {
  func.func @_pool_kernel(%arg0: i32, %arg1: memref<4x320xf32, #tpu.memory_space<vmem>>, %arg2: memref<320x160xf32, #tpu.memory_space<vmem>>, %arg3: memref<4x160xf32, #tpu.memory_space<vmem>>) attributes {dimension_semantics = [#tpu.dimension_semantics<parallel>], iteration_bounds = array<i64: 1>, scalar_prefetch = 0 : i64, scratch_operands = 0 : i64, tpu.core_type = #tpu.core_type<tc>, window_params = [{transform_indices = @transform_0, window_bounds = array<i64: 4, 320>}, {pipeline_mode = #tpu.pipeline_mode<synchronous>, transform_indices = @transform_1, window_bounds = array<i64: 320, 160>}, {transform_indices = @transform_2, window_bounds = array<i64: 4, 160>}]} {
    %c0 = arith.constant 0 : index
    %c0_0 = arith.constant 0 : index
    %0 = vector.load %arg1[%c0, %c0_0] : memref<4x320xf32, #tpu.memory_space<vmem>>, vector<4x320xf32>
    %c0_1 = arith.constant 0 : index
    %c0_2 = arith.constant 0 : index
    %1 = vector.load %arg2[%c0_1, %c0_2] : memref<320x160xf32, #tpu.memory_space<vmem>>, vector<320x160xf32>
    %cst = arith.constant dense<0.000000e+00> : vector<4x160xf32>
    %2 = tpu.matmul %0, %1, %cst {dimension_numbers = #tpu.dot_dimension_numbers<[1], [0], [0], [1], [0, 0, 1, 1], [], []>} : vector<4x320xf32>, vector<320x160xf32>, vector<4x160xf32> -> vector<4x160xf32>
    %c0_3 = arith.constant 0 : index
    %c0_4 = arith.constant 0 : index
    %3 = vector.load %arg3[%c0_3, %c0_4] : memref<4x160xf32, #tpu.memory_space<vmem>>, vector<4x160xf32>
    tpu.vector_store %arg3[%c0_3, %c0_4], %2 {strides = array<i32>} : memref<4x160xf32, #tpu.memory_space<vmem>>, vector<4x160xf32>,
    return
  }
  func.func @transform_0(%arg0: i32) -> (i32, i32) {
    %c0_i32 = arith.constant 0 : i32
    %c0_i32_0 = arith.constant 0 : i32
    return %arg0, %c0_i32 : i32, i32
  }
  func.func @transform_1(%arg0: i32) -> (i32, i32) {
    %c0_i32 = arith.constant 0 : i32
    %c0_i32_0 = arith.constant 0 : i32
    %c0_i32_1 = arith.constant 0 : i32
    return %c0_i32, %c0_i32_0 : i32, i32
  }
  func.func @transform_2(%arg0: i32) -> (i32, i32) {
    %c0_i32 = arith.constant 0 : i32
    %c0_i32_0 = arith.constant 0 : i32
    return %arg0, %c0_i32 : i32, i32
  }
}

</mosaic_0001>

<llo_original>
// kernel: tpu_custom_call.1
$region0: #{tpu_custom_call.1}
  #allocation0 [shape = 'u32[]', space=smem, size = 0x4, offset = 0x4, fixed_abs, tag = 'smem constant byte address 0x4 - core index']
  #allocation1 [shape = 'u32[144,128]{1,0:T(1,128)}', space=vmem, size = 0x12000, scoped, tag = 'internal scratch']
  %s0 = inlined_call_operand.vmem [shape: f32[4,320], index: 0, kind: input, shape index: {}]
  %s1 = inlined_call_operand.vmem [shape: f32[320,160], index: 1, kind: input, shape index: {}]
  %s2 = inlined_call_operand.hbm [shape: f32[4,160], index: 2, kind: output, shape index: {}]
  %s3 = sld [smem:[#allocation0]]
  $region18: #{tpu_custom_call.1} parent=0
    _
  %s5 = ssub.s32 1, %s3
  %s6 = scalar_select 0, %s5, %s3
  $region1: #{tpu_custom_call.1} parent=0
    #allocation2 [shape = 'u8[4096]{0}', space=vmem, size = 0x1000, scoped, tag = 'output window, operand 0, single buffered']
    #allocation3 [shape = 's32[1]{0}', space=sflag, size = 0x4, scoped, tag = 'scoped memory for tpu_custom_call.1']
    %7 = vsyncpa [#allocation3], 0
    // Predicated region
    $region2: #{tpu_custom_call.1} parent=1 // pred_check
      _
    $region3: #{tpu_custom_call.1} parent=1 // pred_check_branch
      %9 = sbr.rel (0) target = $region5
    $region4: #{tpu_custom_call.1} parent=1 // pred_region
      _
    $region5: #{tpu_custom_call.1} parent=1 // pred_fallthru
      _
    // Predicated region
    $region6: #{tpu_custom_call.1} parent=1 // pred_check
      _
    $region7: #{tpu_custom_call.1} parent=1 // pred_check_branch
      %11 = sbr.rel (0) target = $region9
    $region8: #{tpu_custom_call.1} parent=1 // pred_region
      _
    $region9: #{tpu_custom_call.1} parent=1 // pred_fallthru
      _
    %v12 = vld [vmem:[%s0] sm:$0xff]
    %v13 = vld [vmem:[%s0 + $0x8] sm:$0xf]
    %v14 = vld [vmem:[%s1] sm:$0xff]
    %v15 = vld [vmem:[%s1 + $0x8] sm:$0xff]
    %v16 = vld [vmem:[%s1 + $0x10] sm:$0xff]
    %v17 = vld [vmem:[%s1 + $0x18] sm:$0xff]
    %v18 = vld [vmem:[%s1 + $0x20] sm:$0xff]
    %v19 = vld [vmem:[%s1 + $0x28] sm:$0xff]
    %v20 = vld [vmem:[%s1 + $0x30] sm:$0xff]
    %v21 = vld [vmem:[%s1 + $0x38] sm:$0xff]
    %v22 = vld [vmem:[%s1 + $0x40] sm:$0xff]
    %v23 = vld [vmem:[%s1 + $0x48] sm:$0xff]
    %v24 = vld [vmem:[%s1 + $0x50] sm:$0xff]
    %v25 = vld [vmem:[%s1 + $0x58] sm:$0xff]
    %v26 = vld [vmem:[%s1 + $0x60] sm:$0xff]
    %v27 = vld [vmem:[%s1 + $0x68] sm:$0xff]
    %v28 = vld [vmem:[%s1 + $0x70] sm:$0xff]
    %v29 = vld [vmem:[%s1 + $0x78] sm:$0xff]
    %v30 = vld [vmem:[%s1 + $0x80] sm:$0xff]
    %v31 = vld [vmem:[%s1 + $0x88] sm:$0xff]
    %v32 = vld [vmem:[%s1 + $0x90] sm:$0xff]
    %v33 = vld [vmem:[%s1 + $0x98] sm:$0xff]
    %v34 = vld [vmem:[%s1 + $0xa0] sm:$0xff]
    %v35 = vld [vmem:[%s1 + $0xa8] sm:$0xff]
    %v36 = vld [vmem:[%s1 + $0xb0] sm:$0xff]
    %v37 = vld [vmem:[%s1 + $0xb8] sm:$0xff]
    %v38 = vld [vmem:[%s1 + $0xc0] sm:$0xff]
    %v39 = vld [vmem:[%s1 + $0xc8] sm:$0xff]
    %v40 = vld [vmem:[%s1 + $0xd0] sm:$0xff]
    %v41 = vld [vmem:[%s1 + $0xd8] sm:$0xff]
    %v42 = vld [vmem:[%s1 + $0xe0] sm:$0xff]
    %v43 = vld [vmem:[%s1 + $0xe8] sm:$0xff]
    %v44 = vld [vmem:[%s1 + $0xf0] sm:$0xff]
    %v45 = vld [vmem:[%s1 + $0xf8] sm:$0xff]
    %v46 = vld [vmem:[%s1 + $0x100] sm:$0xff]
    %v47 = vld [vmem:[%s1 + $0x108] sm:$0xff]
    %v48 = vld [vmem:[%s1 + $0x110] sm:$0xff]
    %v49 = vld [vmem:[%s1 + $0x118] sm:$0xff]
    %v50 = vld [vmem:[%s1 + $0x120] sm:$0xff]
    %v51 = vld [vmem:[%s1 + $0x128] sm:$0xff]
    %v52 = vld [vmem:[%s1 + $0x130] sm:$0xff]
    %v53 = vld [vmem:[%s1 + $0x138] sm:$0xff]
    %v54 = vld [vmem:[%s1 + $0x140] sm:$0xff]
    %v55 = vld [vmem:[%s1 + $0x148] sm:$0xff]
    %v56 = vld [vmem:[%s1 + $0x150] sm:$0xff]
    %v57 = vld [vmem:[%s1 + $0x158] sm:$0xff]
    %v58 = vld [vmem:[%s1 + $0x160] sm:$0xff]
    %v59 = vld [vmem:[%s1 + $0x168] sm:$0xff]
    %v60 = vld [vmem:[%s1 + $0x170] sm:$0xff]
    %v61 = vld [vmem:[%s1 + $0x178] sm:$0xff]
    %v62 = vld [vmem:[%s1 + $0x180] sm:$0xff]
    %v63 = vld [vmem:[%s1 + $0x188] sm:$0xff]
    %v64 = vld [vmem:[%s1 + $0x190] sm:$0xff]
    %v65 = vld [vmem:[%s1 + $0x198] sm:$0xff]
    %v66 = vld [vmem:[%s1 + $0x1a0] sm:$0xff]
    %v67 = vld [vmem:[%s1 + $0x1a8] sm:$0xff]
    %v68 = vld [vmem:[%s1 + $0x1b0] sm:$0xff]
    %v69 = vld [vmem:[%s1 + $0x1b8] sm:$0xff]
    %v70 = vld [vmem:[%s1 + $0x1c0] sm:$0xff]
    %v71 = vld [vmem:[%s1 + $0x1c8] sm:$0xff]
    %v72 = vld [vmem:[%s1 + $0x1d0] sm:$0xff]
    %v73 = vld [vmem:[%s1 + $0x1d8] sm:$0xff]
    %v74 = vld [vmem:[%s1 + $0x1e0] sm:$0xff]
    %v75 = vld [vmem:[%s1 + $0x1e8] sm:$0xff]
    %v76 = vld [vmem:[%s1 + $0x1f0] sm:$0xff]
    %v77 = vld [vmem:[%s1 + $0x1f8] sm:$0xff]
    %v78 = vld [vmem:[%s1 + $0x200] sm:$0xff]
    %v79 = vld [vmem:[%s1 + $0x208] sm:$0xff]
    %v80 = vld [vmem:[%s1 + $0x210] sm:$0xff]
    %v81 = vld [vmem:[%s1 + $0x218] sm:$0xff]
    %v82 = vld [vmem:[%s1 + $0x220] sm:$0xff]
    %v83 = vld [vmem:[%s1 + $0x228] sm:$0xff]
    %v84 = vld [vmem:[%s1 + $0x230] sm:$0xff]
    %v85 = vld [vmem:[%s1 + $0x238] sm:$0xff]
    %v86 = vld [vmem:[%s1 + $0x240] sm:$0xff]
    %v87 = vld [vmem:[%s1 + $0x248] sm:$0xff]
    %v88 = vld [vmem:[%s1 + $0x250] sm:$0xff]
    %v89 = vld [vmem:[%s1 + $0x258] sm:$0xff]
    %v90 = vld [vmem:[%s1 + $0x260] sm:$0xff]
    %v91 = vld [vmem:[%s1 + $0x268] sm:$0xff]
    %v92 = vld [vmem:[%s1 + $0x270] sm:$0xff]
    %v93 = vld [vmem:[%s1 + $0x278] sm:$0xff]
    %v96 = vcombine.high %v12, %v12
    %vm98 = vcmask 523264
    %v99 = vsel %vm98, %v13, 0
    %101 = vmatprep.subr.mxu0 %v45
    %102 = vmatpush1.msra.mxu0 %v44
    %103 = vmatprep.subr.mxu0 %v43
    %104 = vmatpush1.msra.mxu0 %v42
    %105 = vmatprep.subr.mxu0 %v41
    %106 = vmatpush1.msra.mxu0 %v40
    %107 = vmatprep.subr.mxu0 %v39
    %108 = vmatpush1.msra.mxu0 %v38
    %109 = vmatprep.subr.mxu0 %v37
    %110 = vmatpush1.msra.mxu0 %v36
    %111 = vmatprep.subr.mxu0 %v35
    %112 = vmatpush1.msra.mxu0 %v34
    %113 = vmatprep.subr.mxu0 %v33
    %114 = vmatpush1.msra.mxu0 %v32
    %115 = vmatprep.subr.mxu0 %v31
    %116 = vmatpush1.msra.mxu0 %v30
    %117 = vmatprep.subr.mxu0 %v29
    %118 = vmatpush1.msra.mxu0 %v28
    %119 = vmatprep.subr.mxu0 %v27
    %120 = vmatpush1.msra.mxu0 %v26
    %121 = vmatprep.subr.mxu0 %v25
    %122 = vmatpush1.msra.mxu0 %v24
    %123 = vmatprep.subr.mxu0 %v23
    %124 = vmatpush1.msra.mxu0 %v22
    %125 = vmatprep.subr.mxu0 %v21
    %126 = vmatpush1.msra.mxu0 %v20
    %127 = vmatprep.subr.mxu0 %v19
    %128 = vmatpush1.msra.mxu0 %v18
    %129 = vmatprep.subr.mxu0 %v17
    %130 = vmatpush1.msra.mxu0 %v16
    %131 = vmatprep.subr.mxu0 %v15
    %132 = vmatpush1.msra.mxu0 %v14
    %133 = vmatprep.subr.mxu0 %v77
    %134 = vmatpush2.msra.mxu0 %v76
    %135 = vmatprep.subr.mxu0 %v75
    %136 = vmatpush2.msra.mxu0 %v74
    %137 = vmatprep.subr.mxu0 %v73
    %138 = vmatpush2.msra.mxu0 %v72
    %139 = vmatprep.subr.mxu0 %v71
    %140 = vmatpush2.msra.mxu0 %v70
    %141 = vmatprep.subr.mxu0 %v69
    %142 = vmatpush2.msra.mxu0 %v68
    %143 = vmatprep.subr.mxu0 %v67
    %144 = vmatpush2.msra.mxu0 %v66
    %145 = vmatprep.subr.mxu0 %v65
    %146 = vmatpush2.msra.mxu0 %v64
    %147 = vmatprep.subr.mxu0 %v63
    %148 = vmatpush2.msra.mxu0 %v62
    %149 = vmatprep.subr.mxu0 %v61
    %150 = vmatpush2.msra.mxu0 %v60
    %151 = vmatprep.subr.mxu0 %v59
    %152 = vmatpush2.msra.mxu0 %v58
    %153 = vmatprep.subr.mxu0 %v57
    %154 = vmatpush2.msra.mxu0 %v56
    %155 = vmatprep.subr.mxu0 %v55
    %156 = vmatpush2.msra.mxu0 %v54
    %157 = vmatprep.subr.mxu0 %v53
    %158 = vmatpush2.msra.mxu0 %v52
    %159 = vmatprep.subr.mxu0 %v51
    %160 = vmatpush2.msra.mxu0 %v50
    %161 = vmatprep.subr.mxu0 %v49
    %162 = vmatpush2.msra.mxu0 %v48
    %163 = vmatprep.subr.mxu0 %v47
    %164 = vmatpush2.msra.mxu0 %v46
    %165 = vmatprep.mubr.f32.mxu0 %v96
    %166 = vmatmul.mubr.f32.gmra.mxu0 %v12
    %v167 = vpop.f32.mrf.mxu0
    %v168 = vadd.f32 0.0, %v167
    %v169 = vpop.f32.mrf.mxu0
    %v170 = vadd.f32 0.0, %v169
    %171 = vdwg.mxu0
    %172 = vmatprep.subr.mxu0 0.0
    %173 = vmatpush1.msra.mxu0 0.0
    %174 = vmatprep.subr.mxu0 0.0
    %175 = vmatpush1.msra.mxu0 0.0
    %176 = vmatprep.subr.mxu0 0.0
    %177 = vmatpush1.msra.mxu0 0.0
    %178 = vmatprep.subr.mxu0 0.0
    %179 = vmatpush1.msra.mxu0 0.0
    %180 = vmatprep.subr.mxu0 0.0
    %181 = vmatpush1.msra.mxu0 0.0
    %182 = vmatprep.subr.mxu0 0.0
    %183 = vmatpush1.msra.mxu0 0.0
    %184 = vmatprep.subr.mxu0 0.0
    %185 = vmatpush1.msra.mxu0 0.0
    %186 = vmatprep.subr.mxu0 0.0
    %187 = vmatpush1.msra.mxu0 0.0
    %188 = vmatprep.subr.mxu0 %v93
    %189 = vmatpush1.msra.mxu0 %v92
    %190 = vmatprep.subr.mxu0 %v91
    %191 = vmatpush1.msra.mxu0 %v90
    %192 = vmatprep.subr.mxu0 %v89
    %193 = vmatpush1.msra.mxu0 %v88
    %194 = vmatprep.subr.mxu0 %v87
    %195 = vmatpush1.msra.mxu0 %v86
    %196 = vmatprep.subr.mxu0 %v85
    %197 = vmatpush1.msra.mxu0 %v84
    %198 = vmatprep.subr.mxu0 %v83
    %199 = vmatpush1.msra.mxu0 %v82
    %200 = vmatprep.subr.mxu0 %v81
    %201 = vmatpush1.msra.mxu0 %v80
    %202 = vmatprep.subr.mxu0 %v79
    %203 = vmatpush1.msra.mxu0 %v78
    %204 = vmatprep.subr.mxu0 0.0
    %205 = vmatpush2.msra.mxu0 0.0
    %206 = vmatprep.subr.mxu0 0.0
    %207 = vmatpush2.msra.mxu0 0.0
    %208 = vmatprep.subr.mxu0 0.0
    %209 = vmatpush2.msra.mxu0 0.0
    %210 = vmatprep.subr.mxu0 0.0
    %211 = vmatpush2.msra.mxu0 0.0
    %212 = vmatprep.subr.mxu0 0.0
    %213 = vmatpush2.msra.mxu0 0.0
    %214 = vmatprep.subr.mxu0 0.0
    %215 = vmatpush2.msra.mxu0 0.0
    %216 = vmatprep.subr.mxu0 0.0
    %217 = vmatpush2.msra.mxu0 0.0
    %218 = vmatprep.subr.mxu0 0.0
    %219 = vmatpush2.msra.mxu0 0.0
    %220 = vmatprep.subr.mxu0 0.0
    %221 = vmatpush2.msra.mxu0 0.0
    %222 = vmatprep.subr.mxu0 0.0
    %223 = vmatpush2.msra.mxu0 0.0
    %224 = vmatprep.subr.mxu0 0.0
    %225 = vmatpush2.msra.mxu0 0.0
    %226 = vmatprep.subr.mxu0 0.0
    %227 = vmatpush2.msra.mxu0 0.0
    %228 = vmatprep.subr.mxu0 0.0
    %229 = vmatpush2.msra.mxu0 0.0
    %230 = vmatprep.subr.mxu0 0.0
    %231 = vmatpush2.msra.mxu0 0.0
    %232 = vmatprep.subr.mxu0 0.0
    %233 = vmatpush2.msra.mxu0 0.0
    %234 = vmatprep.subr.mxu0 0.0
    %235 = vmatpush2.msra.mxu0 0.0
    %236 = vmatprep.mubr.f32.mxu0 0.0
    %237 = vmatmul.mubr.f32.gmra.mxu0 %v99
    %v238 = vpop.f32.mrf.mxu0
    %v239 = vadd.f32 %v168, %v238
    %v240 = vpop.f32.mrf.mxu0
    %v241 = vadd.f32 %v170, %v240
    %242 = vdwg.mxu0
    %v245 = vcombine.low %v239, %v241
    %vm247 = vcmask 1043456
    %vm248 = vcmask 261124
    %vm249 = vmor %vm248, %vm247
    %250 = vst.msk [vmem:[#allocation2] sm:$0xff] %vm249, %v245
    // Predicated region
    $region10: #{tpu_custom_call.1} parent=1 // pred_check
      _
    $region11: #{tpu_custom_call.1} parent=1 // pred_check_branch
      %252 = sbr.rel (0) target = $region13
    $region12: #{tpu_custom_call.1} parent=1 // pred_region
      %s254 = ssub.s32 128, 128
      %255 = vsyncadd [#allocation3], %s254
      %s257 = sshll.u32 [#allocation2], 4
      %s258 = int_to_ptr.vmem [resolvable:$true] %s257
      %260 = dma.vmem_to_hbm [thread:$0]  %s258, 128, %s2, [#allocation3]
    $region13: #{tpu_custom_call.1} parent=1 // pred_fallthru
      _
    // Predicated region
    $region14: #{tpu_custom_call.1} parent=1 // pred_check
      _
    $region15: #{tpu_custom_call.1} parent=1 // pred_check_branch
      %262 = sbr.rel (0) target = $region17
    $region16: #{tpu_custom_call.1} parent=1 // pred_region
      %263 = dma.done [#allocation3], 128
    $region17: #{tpu_custom_call.1} parent=1 // pred_fallthru
      _
    %264 = vsyncpa [#allocation3], 1

</llo_original>
